<compile_context>
chip_gen: v5e
topology: v5e:2x2
jax: 0.10.0
libtpu: 0.0.40
codegen_flags: <defaults>
</compile_context>

<pallas_src>
import jax
import jax.numpy as jnp
from jax.experimental import pallas as pl
from jax.experimental.pallas import tpu as pltpu

EPS = 1e-6
LANES = 128


def _charbonnier_sum_kernel(x_ref, y_ref, o_ref):
    """Accumulate sum(sqrt((x - y)^2 + eps)) into a (1, 8, 128) partial-sum block."""
    @pl.when(pl.program_id(1) == 0)
    def _():
        o_ref[...] = jnp.zeros_like(o_ref)

    x = x_ref[...].astype(jnp.float32)
    y = y_ref[...].astype(jnp.float32)
    diff = x - y
    err = jnp.sqrt(diff * diff + EPS)          # (rows_per_block, 128) f32
    # Fold to one vreg worth of partial sums: pure VPU adds, no per-step XLU reduce.
    partial = err.reshape(-1, 8, LANES).sum(axis=0)   # (8, 128)
    o_ref[...] += partial[None]


def l1_charbonnier_loss(x, y, *, rows_per_block=2048):
    assert x.shape == y.shape
    n = int(x.size)

    xf = x.reshape(-1)          # native dtype, no copy for contiguous inputs
    yf = y.reshape(-1)

    # Sublane alignment for the block's second-to-last dim (f32: 8, bf16: 16, int8: 32).
    itemsize = jnp.dtype(x.dtype).itemsize
    sublane = max(8, 32 // max(1, itemsize))

    full_rows = n // LANES
    rpb = min(rows_per_block, full_rows)
    rpb = (rpb // sublane) * sublane

    main_sum = jnp.zeros((), jnp.float32)
    n_main = 0

    if rpb > 0:
        num_blocks = full_rows // rpb
        n_cores = 2 if num_blocks >= 2 else 1          # v7x megacore split; harmless elsewhere
        blocks_per_core = num_blocks // n_cores
        main_rows = n_cores * blocks_per_core * rpb
        n_main = main_rows * LANES

        # Reshape the 128-aligned prefix; the grid only touches whole blocks so the
        # ragged remainder rows of x2d (if any) are simply never read.
        x2d = xf[: full_rows * LANES].reshape(full_rows, LANES)
        y2d = yf[: full_rows * LANES].reshape(full_rows, LANES)

        in_map = lambda c, i: (c * blocks_per_core + i, 0)

        partials = pl.pallas_call(
            _charbonnier_sum_kernel,
            out_shape=jax.ShapeDtypeStruct((n_cores, 8, LANES), jnp.float32),
            grid_spec=pltpu.PrefetchScalarGridSpec(
                num_scalar_prefetch=0,
                grid=(n_cores, blocks_per_core),
                in_specs=[
                    pl.BlockSpec((rpb, LANES), in_map),
                    pl.BlockSpec((rpb, LANES), in_map),
                ],
                out_specs=pl.BlockSpec((1, 8, LANES), lambda c, i: (c, 0, 0)),
            ),
            compiler_params=pltpu.CompilerParams(
                dimension_semantics=("parallel", "arbitrary"),
            ),
        )(x2d, y2d)
        main_sum = jnp.sum(partials)

    # Exact handling of the (< one block) tail with plain jnp — no full-array pad copy.
    if n_main < n:
        xt = xf[n_main:].astype(jnp.float32)
        yt = yf[n_main:].astype(jnp.float32)
        dt = xt - yt
        tail_sum = jnp.sum(jnp.sqrt(dt * dt + EPS))
    else:
        tail_sum = jnp.zeros((), jnp.float32)

    return (main_sum + tail_sum) / jnp.float32(n)


if __name__ == "__main__":
    key = jax.random.PRNGKey(0)
    kx, ky = jax.random.split(key)

    # NCHW inputs, as the PyTorch module would receive.
    x = jax.random.normal(kx, (2, 4, 16, 16), dtype=jnp.float32)
    y = jax.random.normal(ky, (2, 4, 16, 16), dtype=jnp.float32)

    loss = l1_charbonnier_loss(x, y)
    jax.block_until_ready(loss)
    ref = jnp.mean(jnp.sqrt((x - y) ** 2 + EPS))
    assert jnp.allclose(loss, ref, rtol=1e-5, atol=1e-6), (loss, ref)

    # Ragged shape exercising the kernel + jnp-tail path.
    kx2, ky2 = jax.random.split(ky)
    x2 = jax.random.normal(kx2, (2, 3, 17, 19), dtype=jnp.float32)
    y2 = jax.random.normal(ky2, (2, 3, 17, 19), dtype=jnp.float32)
    loss2 = l1_charbonnier_loss(x2, y2)
    jax.block_until_ready(loss2)
    ref2 = jnp.mean(jnp.sqrt((x2 - y2) ** 2 + EPS))
    assert jnp.allclose(loss2, ref2, rtol=1e-5, atol=1e-6), (loss2, ref2)

    print("KERNEL_OK")
</pallas_src>

<mosaic_0001>
module attributes {stable_mosaic.version = 11 : i64} {
  func.func @_charbonnier_sum_kernel(%arg0: i32, %arg1: i32, %arg2: memref<16x128xf32, #tpu.memory_space<vmem>>, %arg3: memref<16x128xf32, #tpu.memory_space<vmem>>, %arg4: memref<1x8x128xf32, #tpu.memory_space<vmem>>) attributes {dimension_semantics = [#tpu.dimension_semantics<parallel>, #tpu.dimension_semantics<arbitrary>], iteration_bounds = array<i64: 1, 1>, scalar_prefetch = 0 : i64, scratch_operands = 0 : i64, tpu.core_type = #tpu.core_type<tc>, window_params = [{transform_indices = @transform_0, window_bounds = array<i64: 16, 128>}, {transform_indices = @transform_1, window_bounds = array<i64: 16, 128>}, {transform_indices = @transform_2, window_bounds = array<i64: 1, 8, 128>}]} {
    %c0_i32 = arith.constant 0 : i32
    %0 = arith.cmpi eq, %arg1, %c0_i32 : i32
    %1 = arith.extui %0 : i1 to i32
    %c0_i32_0 = arith.constant 0 : i32
    %2 = arith.cmpi ne, %1, %c0_i32_0 : i32
    scf.if %2 {
      %cst_11 = arith.constant 0.000000e+00 : f32
      %16 = vector.broadcast %cst_11 : f32 to vector<1x8x128xf32>
      %c0_12 = arith.constant 0 : index
      %c0_13 = arith.constant 0 : index
      %c0_14 = arith.constant 0 : index
      %17 = vector.load %arg4[%c0_12, %c0_13, %c0_14] : memref<1x8x128xf32, #tpu.memory_space<vmem>>, vector<1x8x128xf32>
      tpu.vector_store %arg4[%c0_12, %c0_13, %c0_14], %16 {strides = array<i32>} : memref<1x8x128xf32, #tpu.memory_space<vmem>>, vector<1x8x128xf32>,
    } else {
    }
    %c0 = arith.constant 0 : index
    %c0_1 = arith.constant 0 : index
    %3 = vector.load %arg2[%c0, %c0_1] : memref<16x128xf32, #tpu.memory_space<vmem>>, vector<16x128xf32>
    %c0_2 = arith.constant 0 : index
    %c0_3 = arith.constant 0 : index
    %4 = vector.load %arg3[%c0_2, %c0_3] : memref<16x128xf32, #tpu.memory_space<vmem>>, vector<16x128xf32>
    %5 = arith.subf %3, %4 : vector<16x128xf32>
    %6 = arith.mulf %5, %5 : vector<16x128xf32>
    %cst = arith.constant 9.99999997E-7 : f32
    %7 = vector.broadcast %cst : f32 to vector<16x128xf32>
    %8 = arith.addf %6, %7 : vector<16x128xf32>
    %9 = math.sqrt %8 : vector<16x128xf32>
    %10 = vector.shape_cast %9 : vector<16x128xf32> to vector<2x8x128xf32>
    %cst_4 = arith.constant dense<0.000000e+00> : vector<8x128xf32>
    %11 = vector.multi_reduction <add>, %10, %cst_4 [0] : vector<2x8x128xf32> to vector<8x128xf32>
    %c0_5 = arith.constant 0 : index
    %c0_6 = arith.constant 0 : index
    %c0_7 = arith.constant 0 : index
    %12 = vector.load %arg4[%c0_5, %c0_6, %c0_7] : memref<1x8x128xf32, #tpu.memory_space<vmem>>, vector<1x8x128xf32>
    %13 = vector.shape_cast %11 : vector<8x128xf32> to vector<1x8x128xf32>
    %14 = arith.addf %12, %13 : vector<1x8x128xf32>
    %c0_8 = arith.constant 0 : index
    %c0_9 = arith.constant 0 : index
    %c0_10 = arith.constant 0 : index
    %15 = vector.load %arg4[%c0_8, %c0_9, %c0_10] : memref<1x8x128xf32, #tpu.memory_space<vmem>>, vector<1x8x128xf32>
    tpu.vector_store %arg4[%c0_8, %c0_9, %c0_10], %14 {strides = array<i32>} : memref<1x8x128xf32, #tpu.memory_space<vmem>>, vector<1x8x128xf32>,
    return
  }
  func.func @transform_0(%arg0: i32, %arg1: i32) -> (i32, i32) {
    %c1_i32 = arith.constant 1 : i32
    %0 = arith.muli %arg0, %c1_i32 : i32
    %1 = arith.addi %0, %arg1 : i32
    %c0_i32 = arith.constant 0 : i32
    %c0_i32_0 = arith.constant 0 : i32
    return %1, %c0_i32 : i32, i32
  }
  func.func @transform_1(%arg0: i32, %arg1: i32) -> (i32, i32) {
    %c1_i32 = arith.constant 1 : i32
    %0 = arith.muli %arg0, %c1_i32 : i32
    %1 = arith.addi %0, %arg1 : i32
    %c0_i32 = arith.constant 0 : i32
    %c0_i32_0 = arith.constant 0 : i32
    return %1, %c0_i32 : i32, i32
  }
  func.func @transform_2(%arg0: i32, %arg1: i32) -> (i32, i32, i32) {
    %c0_i32 = arith.constant 0 : i32
    %c0_i32_0 = arith.constant 0 : i32
    %c0_i32_1 = arith.constant 0 : i32
    return %arg0, %c0_i32, %c0_i32_0 : i32, i32, i32
  }
}

</mosaic_0001>

<llo_original>
// kernel: tpu_custom_call.1
$region0: #{tpu_custom_call.1}
  #allocation0 [shape = 'u32[]', space=smem, size = 0x4, offset = 0x4, fixed_abs, tag = 'smem constant byte address 0x4 - core index']
  #allocation1 [shape = 'u32[72,128]{1,0:T(1,128)}', space=vmem, size = 0x9000, scoped, tag = 'internal scratch']
  %s0 = inlined_call_operand.hbm [shape: f32[16,128], index: 0, kind: input, shape index: {}]
  %s1 = inlined_call_operand.hbm [shape: f32[16,128], index: 1, kind: input, shape index: {}]
  %s2 = inlined_call_operand.hbm [shape: f32[1,8,128], index: 2, kind: output, shape index: {}]
  %s3 = sld [smem:[#allocation0]]
  $region30: #{tpu_custom_call.1} parent=0
    _
  %s5 = ssub.s32 1, %s3
  %s6 = scalar_select 0, %s5, %s3
  $region1: #{tpu_custom_call.1} parent=0
    #allocation2 [shape = 'u8[8192]{0}', space=vmem, size = 0x2000, scoped, tag = 'input window, operand 0, single buffered']
    #allocation3 [shape = 's32[1]{0}', space=sflag, size = 0x4, scoped, tag = 'scoped memory for tpu_custom_call.1']
    #allocation4 [shape = 's32[1]{0}', space=sflag, size = 0x4, scoped, tag = 'scoped memory for tpu_custom_call.1']
    #allocation5 [shape = 'u8[8192]{0}', space=vmem, size = 0x2000, scoped, tag = 'input window, operand 1, single buffered']
    #allocation6 [shape = 's32[1]{0}', space=sflag, size = 0x4, scoped, tag = 'scoped memory for tpu_custom_call.1']
    #allocation7 [shape = 'u8[4096]{0}', space=vmem, size = 0x1000, scoped, tag = 'output window, operand 0, single buffered']
    %7 = vsyncpa [#allocation3], 0
    %8 = vsyncpa [#allocation6], 0
    %9 = vsyncpa [#allocation4], 0
    // Predicated region
    $region2: #{tpu_custom_call.1} parent=1 // pred_check
      _
    $region3: #{tpu_custom_call.1} parent=1 // pred_check_branch
      %11 = sbr.rel (0) target = $region5
    $region4: #{tpu_custom_call.1} parent=1 // pred_region
      %s12 = sadd.s32 0, 0
      %s13 = smul.u32 2, %s12
      %15 = vsyncadd [#allocation3], 0
      %s16 = smul.addr %s13, 8
      %s17 = scalar_lea.hbm %s0, %s16
      %s18 = sshll.u32 %s17, 4
      %s19 = int_to_ptr.hbm [resolvable:$true] %s18
      %s20 = sshll.u32 [#allocation2], 4
      %s21 = int_to_ptr.vmem [resolvable:$true] %s20
      %26 = dma.hbm_to_vmem [thread:$0]  %s19, 256, %s21, [#allocation3], 128, 128, 8
    $region5: #{tpu_custom_call.1} parent=1 // pred_fallthru
      _
    // Predicated region
    $region6: #{tpu_custom_call.1} parent=1 // pred_check
      _
    $region7: #{tpu_custom_call.1} parent=1 // pred_check_branch
      %28 = sbr.rel (0) target = $region9
    $region8: #{tpu_custom_call.1} parent=1 // pred_region
      %s29 = sadd.s32 0, 0
      %s30 = smul.u32 2, %s29
      %32 = vsyncadd [#allocation6], 0
      %s33 = smul.addr %s30, 8
      %s34 = scalar_lea.hbm %s1, %s33
      %s35 = sshll.u32 %s34, 4
      %s36 = int_to_ptr.hbm [resolvable:$true] %s35
      %s37 = sshll.u32 [#allocation5], 4
      %s38 = int_to_ptr.vmem [resolvable:$true] %s37
      %43 = dma.hbm_to_vmem [thread:$0]  %s36, 256, %s38, [#allocation6], 128, 128, 8
    $region9: #{tpu_custom_call.1} parent=1 // pred_fallthru
      _
    // Predicated region
    $region10: #{tpu_custom_call.1} parent=1 // pred_check
      _
    $region11: #{tpu_custom_call.1} parent=1 // pred_check_branch
      %45 = sbr.rel (0) target = $region13
    $region12: #{tpu_custom_call.1} parent=1 // pred_region
      %47 = dma.done [#allocation3], 256
    $region13: #{tpu_custom_call.1} parent=1 // pred_fallthru
      _
    // Predicated region
    $region14: #{tpu_custom_call.1} parent=1 // pred_check
      _
    $region15: #{tpu_custom_call.1} parent=1 // pred_check_branch
      %49 = sbr.rel (0) target = $region17
    $region16: #{tpu_custom_call.1} parent=1 // pred_region
      %51 = dma.done [#allocation6], 256
    $region17: #{tpu_custom_call.1} parent=1 // pred_fallthru
      _
    %s52 = sadd.s32 0, 0
    %s53 = smul.u32 2, %s52
    %s54 = sadd.s32 0, 0
    %s55 = smul.u32 2, %s54
    %p56 = scmp.eq.s32.totalorder 0, 0
    // Predicated region
    $region18: #{tpu_custom_call.1} parent=1 // pred_check
      %p57 = pneg %p56
    $region19: #{tpu_custom_call.1} parent=1 // pred_check_branch
      %59 = sbr.rel (%p57) target = $region21
    $region20: #{tpu_custom_call.1} parent=1 // pred_region
      %60 = vst [vmem:[#allocation7] sm:$0xff] 0.0
    $region21: #{tpu_custom_call.1} parent=1 // pred_fallthru
      _
    %v61 = vld [vmem:[#allocation2] sm:$0xff]
    %v62 = vld [vmem:[#allocation2 + $0x8] sm:$0xff]
    %v63 = vld [vmem:[#allocation5] sm:$0xff]
    %v64 = vld [vmem:[#allocation5 + $0x8] sm:$0xff]
    %v65 = vsub.f32 %v61, %v63
    %v66 = vsub.f32 %v62, %v64
    %v67 = vmul.f32 %v65, %v65
    %v68 = vmul.f32 %v66, %v66
    %v69 = vadd.f32 %v67, 1e-06
    %v70 = vadd.f32 %v68, 1e-06
    %v71 = vrsqrt.pop %v69
    %v72 = vmul.f32 %v71, %v69
    %v73 = vmul.f32 %v72, %v71
    %v74 = vmul.f32 0.5, %v73
    %v75 = vsub.f32 1.5, %v74
    %v76 = vmul.f32 %v71, %v75
    %v77 = vmul.f32 %v69, %v76
    %vm78 = vcmp.eq.f32.partialorder %v69, inf
    %v79 = vsel %vm78, %v69, %v77
    %vm80 = vcmp.eq.f32.partialorder %v69, 0.0
    %v81 = vand.u32 %v69, 2147483648
    %v82 = vsel %vm80, %v81, %v79
    %v83 = vrsqrt.pop %v70
    %v84 = vmul.f32 %v83, %v70
    %v85 = vmul.f32 %v84, %v83
    %v86 = vmul.f32 0.5, %v85
    %v87 = vsub.f32 1.5, %v86
    %v88 = vmul.f32 %v83, %v87
    %v89 = vmul.f32 %v70, %v88
    %vm90 = vcmp.eq.f32.partialorder %v70, inf
    %v91 = vsel %vm90, %v70, %v89
    %vm92 = vcmp.eq.f32.partialorder %v70, 0.0
    %v93 = vand.u32 %v70, 2147483648
    %v94 = vsel %vm92, %v93, %v91
    %v95 = vadd.f32 %v82, %v94
    %v96 = vld [vmem:[#allocation7] sm:$0xff]
    %v97 = vadd.f32 %v96, %v95
    %98 = vst [vmem:[#allocation7] sm:$0xff] %v97
    // Predicated region
    $region22: #{tpu_custom_call.1} parent=1 // pred_check
      _
    $region23: #{tpu_custom_call.1} parent=1 // pred_check_branch
      %100 = sbr.rel (0) target = $region25
    $region24: #{tpu_custom_call.1} parent=1 // pred_region
      %102 = vsyncadd [#allocation4], 0
      %s104 = sshll.u32 [#allocation7], 4
      %s105 = int_to_ptr.vmem [resolvable:$true] %s104
      %s106 = sshll.u32 %s2, 4
      %s107 = int_to_ptr.hbm [resolvable:$true] %s106
      %109 = dma.vmem_to_hbm [thread:$0]  %s105, 128, %s107, [#allocation4]
    $region25: #{tpu_custom_call.1} parent=1 // pred_fallthru
      _
    // Predicated region
    $region26: #{tpu_custom_call.1} parent=1 // pred_check
      _
    $region27: #{tpu_custom_call.1} parent=1 // pred_check_branch
      %111 = sbr.rel (0) target = $region29
    $region28: #{tpu_custom_call.1} parent=1 // pred_region
      %113 = dma.done [#allocation4], 128
    $region29: #{tpu_custom_call.1} parent=1 // pred_fallthru
      _
    %114 = vsyncpa [#allocation3], 1
    %115 = vsyncpa [#allocation6], 1
    %116 = vsyncpa [#allocation4], 1

</llo_original>
